<compile_context>
chip_gen: v6e
topology: v6e:2x2x1
jax: 0.10.0
libtpu: 0.0.40
codegen_flags: <defaults>
</compile_context>

<pallas_src>
import functools
import math

import jax
import jax.numpy as jnp
from jax.experimental import pallas as pl
from jax.experimental.pallas import tpu as pltpu


def _round_up(a, b):
    return -(-a // b) * b


# ------------------------------- kernel --------------------------------------

def _patch_embed_kernel(x_ref, w_ref, b_ref, g_ref, beta_ref, o_ref, *,
                        eps, inv_cout):
    # x_ref:    (1, TN, Kp)   bf16  im2col rows for this (batch, row-tile)
    # w_ref:    (Kp, Cout)    bf16  folded conv weight
    # b_ref:    (1, Cout)     f32   conv bias
    # g_ref:    (1, Cout)     f32   LayerNorm gamma
    # beta_ref: (1, Cout)     f32   LayerNorm beta
    # o_ref:    (1, TN, Cout)       output row-tile (lane-dense, no reshape)
    #
    # One wide-K MXU matmul per tile; f32 accumulation inside the MXU.
    y = jnp.dot(x_ref[0], w_ref[...], preferred_element_type=jnp.float32)
    y = y + b_ref[...]

    # Single-pass LayerNorm (sum and sum-of-squares -> mean / biased variance).
    mean = jnp.sum(y, axis=-1, keepdims=True) * inv_cout
    ex2 = jnp.sum(y * y, axis=-1, keepdims=True) * inv_cout
    var = jnp.maximum(ex2 - mean * mean, 0.0)
    y = (y - mean) * jax.lax.rsqrt(var + eps)
    y = y * g_ref[...] + beta_ref[...]

    o_ref[0] = y.astype(o_ref.dtype)


# ------------------------------- wrapper --------------------------------------

def patch_embedding_forward(x_nchw, w_oihw, b, gamma, beta, *,
                            stride, padding, eps=1e-5, block_rows=None,
                            compute_dtype=jnp.bfloat16, out_dtype=None):
    """Fused Conv2d + flatten + LayerNorm.

    Returns (x_seq of shape (B, N, Cout), Hout, Wout), matching the PyTorch
    module. `out_dtype` defaults to the input dtype (pass jnp.bfloat16 to halve
    the output HBM stream).
    """
    B, Cin, H, W = x_nchw.shape
    Cout, Cin_w, k, k2 = w_oihw.shape
    assert Cin_w == Cin and k == k2
    s, p = stride, padding
    Hout = (H + 2 * p - k) // s + 1
    Wout = (W + 2 * p - k) // s + 1
    N = Hout * Wout
    K = k * k * Cin
    Kp = _round_up(K, 8)                 # sublane multiple only; no zero taps
    out_dtype = x_nchw.dtype if out_dtype is None else out_dtype

    # ---- one-time layout plumbing (XLA): zero-padded NHWC -> im2col (B, N, Kp)
    xp = jnp.transpose(x_nchw, (0, 2, 3, 1)).astype(compute_dtype)      # NHWC
    xp = jnp.pad(xp, ((0, 0), (p, p), (p, p), (0, 0)))
    Hp_need = (Hout - 1) * s + k
    Wp_need = (Wout - 1) * s + k
    xp = xp[:, :Hp_need, :Wp_need, :]
    patches = []
    for ki in range(k):
        for kj in range(k):
            patches.append(xp[:, ki:ki + (Hout - 1) * s + 1:s,
                               kj:kj + (Wout - 1) * s + 1:s, :])
    xim = jnp.concatenate(patches, axis=-1)              # (B, Hout, Wout, K)
    xim = jnp.pad(xim, ((0, 0), (0, 0), (0, 0), (0, Kp - K)))
    xim = xim.reshape(B, N, Kp)

    # conv weight (Cout, Cin, k, k) -> (Kp, Cout), flattened as (ki, kj, ci)
    wm = jnp.transpose(w_oihw, (2, 3, 1, 0)).reshape(K, Cout)
    wm = jnp.pad(wm, ((0, Kp - K), (0, 0))).astype(compute_dtype)

    b2 = b.reshape(1, Cout).astype(jnp.float32)
    g2 = gamma.reshape(1, Cout).astype(jnp.float32)
    be2 = beta.reshape(1, Cout).astype(jnp.float32)

    # ---- row tiling over the flattened token axis: target ~256 rows per tile
    if block_rows is None:
        TN = min(256, _round_up(N, 8))
    else:
        TN = _round_up(int(block_rows), 8)
    Np = _round_up(N, TN)                # masked tail: pad, then slice off
    if Np > N:
        xim = jnp.pad(xim, ((0, 0), (0, Np - N), (0, 0)))
    T = Np // TN

    # ---- explicit VMEM budget (double-buffered blocks), capped for v7x (64 MiB)
    itemsize_c = jnp.dtype(compute_dtype).itemsize
    itemsize_o = jnp.dtype(out_dtype).itemsize
    needed = (2 * TN * Kp * itemsize_c        # x block, double-buffered
              + 2 * Kp * Cout * itemsize_c    # weights (constant index)
              + 2 * TN * Cout * itemsize_o    # output block, double-buffered
              + 6 * Cout * 4)                 # bias / gamma / beta
    vmem_limit = min(max(2 * needed, 16 * 1024 * 1024), 48 * 1024 * 1024)

    kernel = functools.partial(_patch_embed_kernel, eps=eps, inv_cout=1.0 / Cout)

    out = pl.pallas_call(
        kernel,
        out_shape=jax.ShapeDtypeStruct((B, Np, Cout), out_dtype),
        grid=(B, T),
        in_specs=[
            pl.BlockSpec((1, TN, Kp), lambda bi, ti: (bi, ti, 0)),
            pl.BlockSpec((Kp, Cout), lambda bi, ti: (0, 0)),
            pl.BlockSpec((1, Cout), lambda bi, ti: (0, 0)),
            pl.BlockSpec((1, Cout), lambda bi, ti: (0, 0)),
            pl.BlockSpec((1, Cout), lambda bi, ti: (0, 0)),
        ],
        out_specs=pl.BlockSpec((1, TN, Cout), lambda bi, ti: (bi, ti, 0)),
        compiler_params=pltpu.CompilerParams(
            dimension_semantics=("parallel", "parallel"),
            vmem_limit_bytes=vmem_limit),
    )(xim, wm, b2, g2, be2)

    return out[:, :N, :], Hout, Wout


# --------------------------- pure-JAX reference --------------------------------

def reference_patch_embedding(x_nchw, w_oihw, b, gamma, beta, *,
                              stride, padding, eps=1e-5):
    x = jnp.transpose(x_nchw, (0, 2, 3, 1)).astype(jnp.float32)
    w = jnp.transpose(w_oihw, (2, 3, 1, 0)).astype(jnp.float32)   # HWIO
    y = jax.lax.conv_general_dilated(
        x, w, (stride, stride), [(padding, padding), (padding, padding)],
        dimension_numbers=("NHWC", "HWIO", "NHWC")) + b
    B, Ho, Wo, Co = y.shape
    y = y.reshape(B, Ho * Wo, Co)
    m = y.mean(-1, keepdims=True)
    v = ((y - m) ** 2).mean(-1, keepdims=True)
    y = (y - m) / jnp.sqrt(v + eps) * gamma + beta
    return y, Ho, Wo


# ---------------------------------- main ---------------------------------------

if __name__ == "__main__":
    configs = [
        # (B, Cin, H,  W,  Cout, k, s, p)
        (2, 3, 64, 64, 64, 7, 4, 3),   # stage-1 style overlapped patches (K=147)
        (2, 32, 16, 16, 64, 3, 2, 1),  # later-stage style 3x3 / stride 2 (K=288)
        (1, 3, 96, 96, 32, 7, 4, 3),   # N=576 -> multiple row tiles + masked tail
    ]
    key = jax.random.PRNGKey(0)
    for (B, Cin, H, W, Cout, k, s, p) in configs:
        key, kx, kw, kb, kg, kbe = jax.random.split(key, 6)
        bound = 1.0 / math.sqrt(Cin * k * k)
        x = jax.random.normal(kx, (B, Cin, H, W), dtype=jnp.float32)
        wt = jax.random.uniform(kw, (Cout, Cin, k, k), jnp.float32, -bound, bound)
        bias = jax.random.uniform(kb, (Cout,), jnp.float32, -bound, bound)
        gamma = 1.0 + 0.02 * jax.random.normal(kg, (Cout,), jnp.float32)
        beta = 0.02 * jax.random.normal(kbe, (Cout,), jnp.float32)

        out, ho, wo = patch_embedding_forward(
            x, wt, bias, gamma, beta, stride=s, padding=p)
        out = jax.block_until_ready(out)

        ref, ho_r, wo_r = reference_patch_embedding(
            x, wt, bias, gamma, beta, stride=s, padding=p)
        ref = jax.block_until_ready(ref)

        assert (ho, wo) == (ho_r, wo_r), ((ho, wo), (ho_r, wo_r))
        assert out.shape == ref.shape, (out.shape, ref.shape)
        assert bool(jnp.all(jnp.isfinite(out)))
        max_err = float(jnp.max(jnp.abs(out.astype(jnp.float32) - ref)))
        assert max_err < 5e-2, max_err   # bf16 matmul operands, f32 accumulation

    print("KERNEL_OK")
</pallas_src>

<mosaic_0001>
module attributes {stable_mosaic.version = 11 : i64} {
  func.func @_patch_embed_kernel(%arg0: i32, %arg1: i32, %arg2: memref<1x256x152xbf16, #tpu.memory_space<vmem>>, %arg3: memref<152x64xbf16, #tpu.memory_space<vmem>>, %arg4: memref<1x64xf32, #tpu.memory_space<vmem>>, %arg5: memref<1x64xf32, #tpu.memory_space<vmem>>, %arg6: memref<1x64xf32, #tpu.memory_space<vmem>>, %arg7: memref<1x256x64xf32, #tpu.memory_space<vmem>>) attributes {dimension_semantics = [#tpu.dimension_semantics<parallel>, #tpu.dimension_semantics<parallel>], iteration_bounds = array<i64: 2, 1>, scalar_prefetch = 0 : i64, scratch_operands = 0 : i64, tpu.core_type = #tpu.core_type<tc>, window_params = [{transform_indices = @transform_0, window_bounds = array<i64: 1, 256, 152>}, {pipeline_mode = #tpu.pipeline_mode<synchronous>, transform_indices = @transform_1, window_bounds = array<i64: 152, 64>}, {pipeline_mode = #tpu.pipeline_mode<synchronous>, transform_indices = @transform_2, window_bounds = array<i64: 1, 64>}, {pipeline_mode = #tpu.pipeline_mode<synchronous>, transform_indices = @transform_3, window_bounds = array<i64: 1, 64>}, {pipeline_mode = #tpu.pipeline_mode<synchronous>, transform_indices = @transform_4, window_bounds = array<i64: 1, 64>}, {transform_indices = @transform_5, window_bounds = array<i64: 1, 256, 64>}]} {
    %c0 = arith.constant 0 : index
    %c0_0 = arith.constant 0 : index
    %c0_1 = arith.constant 0 : index
    %0 = vector.load %arg2[%c0, %c0_0, %c0_1] : memref<1x256x152xbf16, #tpu.memory_space<vmem>>, vector<1x256x152xbf16>
    %1 = vector.shape_cast %0 : vector<1x256x152xbf16> to vector<256x152xbf16>
    %c0_2 = arith.constant 0 : index
    %c0_3 = arith.constant 0 : index
    %2 = vector.load %arg3[%c0_2, %c0_3] : memref<152x64xbf16, #tpu.memory_space<vmem>>, vector<152x64xbf16>
    %cst = arith.constant dense<0.000000e+00> : vector<256x64xf32>
    %3 = tpu.matmul %1, %2, %cst {dimension_numbers = #tpu.dot_dimension_numbers<[1], [0], [0], [1], [0, 0, 1, 1], [], []>} : vector<256x152xbf16>, vector<152x64xbf16>, vector<256x64xf32> -> vector<256x64xf32>
    %c0_4 = arith.constant 0 : index
    %c0_5 = arith.constant 0 : index
    %4 = vector.load %arg4[%c0_4, %c0_5] : memref<1x64xf32, #tpu.memory_space<vmem>>, vector<1x64xf32>
    %5 = vector.broadcast %4 : vector<1x64xf32> to vector<256x64xf32>
    %6 = arith.addf %3, %5 : vector<256x64xf32>
    %cst_6 = arith.constant dense<0.000000e+00> : vector<256xf32>
    %7 = vector.multi_reduction <add>, %6, %cst_6 [1] : vector<256x64xf32> to vector<256xf32>
    %8 = vector.shape_cast %7 : vector<256xf32> to vector<256x1xf32>
    %cst_7 = arith.constant 1.562500e-02 : f32
    %9 = vector.broadcast %cst_7 : f32 to vector<256x1xf32>
    %10 = arith.mulf %8, %9 : vector<256x1xf32>
    %11 = arith.mulf %6, %6 : vector<256x64xf32>
    %cst_8 = arith.constant dense<0.000000e+00> : vector<256xf32>
    %12 = vector.multi_reduction <add>, %11, %cst_8 [1] : vector<256x64xf32> to vector<256xf32>
    %13 = vector.shape_cast %12 : vector<256xf32> to vector<256x1xf32>
    %cst_9 = arith.constant 1.562500e-02 : f32
    %14 = vector.broadcast %cst_9 : f32 to vector<256x1xf32>
    %15 = arith.mulf %13, %14 : vector<256x1xf32>
    %16 = arith.mulf %10, %10 : vector<256x1xf32>
    %17 = arith.subf %15, %16 : vector<256x1xf32>
    %cst_10 = arith.constant 0.000000e+00 : f32
    %18 = vector.broadcast %cst_10 : f32 to vector<256x1xf32>
    %19 = arith.maximumf %17, %18 : vector<256x1xf32>
    %20 = vector.broadcast %10 : vector<256x1xf32> to vector<256x64xf32>
    %21 = arith.subf %6, %20 : vector<256x64xf32>
    %cst_11 = arith.constant 9.99999974E-6 : f32
    %22 = vector.broadcast %cst_11 : f32 to vector<256x1xf32>
    %23 = arith.addf %19, %22 : vector<256x1xf32>
    %24 = math.rsqrt %23 : vector<256x1xf32>
    %25 = vector.broadcast %24 : vector<256x1xf32> to vector<256x64xf32>
    %26 = arith.mulf %21, %25 : vector<256x64xf32>
    %c0_12 = arith.constant 0 : index
    %c0_13 = arith.constant 0 : index
    %27 = vector.load %arg5[%c0_12, %c0_13] : memref<1x64xf32, #tpu.memory_space<vmem>>, vector<1x64xf32>
    %28 = vector.broadcast %27 : vector<1x64xf32> to vector<256x64xf32>
    %29 = arith.mulf %26, %28 : vector<256x64xf32>
    %c0_14 = arith.constant 0 : index
    %c0_15 = arith.constant 0 : index
    %30 = vector.load %arg6[%c0_14, %c0_15] : memref<1x64xf32, #tpu.memory_space<vmem>>, vector<1x64xf32>
    %31 = vector.broadcast %30 : vector<1x64xf32> to vector<256x64xf32>
    %32 = arith.addf %29, %31 : vector<256x64xf32>
    %c0_16 = arith.constant 0 : index
    %c0_17 = arith.constant 0 : index
    %c0_18 = arith.constant 0 : index
    %33 = vector.load %arg7[%c0_16, %c0_17, %c0_18] : memref<1x256x64xf32, #tpu.memory_space<vmem>>, vector<1x256x64xf32>
    %34 = vector.shape_cast %33 : vector<1x256x64xf32> to vector<256x64xf32>
    %35 = vector.shape_cast %32 : vector<256x64xf32> to vector<1x256x64xf32>
    tpu.vector_store %arg7[%c0_16, %c0_17, %c0_18], %35 {strides = array<i32>} : memref<1x256x64xf32, #tpu.memory_space<vmem>>, vector<1x256x64xf32>,
    return
  }
  func.func @transform_0(%arg0: i32, %arg1: i32) -> (i32, i32, i32) {
    %c0_i32 = arith.constant 0 : i32
    %c0_i32_0 = arith.constant 0 : i32
    return %arg0, %arg1, %c0_i32 : i32, i32, i32
  }
  func.func @transform_1(%arg0: i32, %arg1: i32) -> (i32, i32) {
    %c0_i32 = arith.constant 0 : i32
    %c0_i32_0 = arith.constant 0 : i32
    %c0_i32_1 = arith.constant 0 : i32
    return %c0_i32, %c0_i32_0 : i32, i32
  }
  func.func @transform_2(%arg0: i32, %arg1: i32) -> (i32, i32) {
    %c0_i32 = arith.constant 0 : i32
    %c0_i32_0 = arith.constant 0 : i32
    %c0_i32_1 = arith.constant 0 : i32
    return %c0_i32, %c0_i32_0 : i32, i32
  }
  func.func @transform_3(%arg0: i32, %arg1: i32) -> (i32, i32) {
    %c0_i32 = arith.constant 0 : i32
    %c0_i32_0 = arith.constant 0 : i32
    %c0_i32_1 = arith.constant 0 : i32
    return %c0_i32, %c0_i32_0 : i32, i32
  }
  func.func @transform_4(%arg0: i32, %arg1: i32) -> (i32, i32) {
    %c0_i32 = arith.constant 0 : i32
    %c0_i32_0 = arith.constant 0 : i32
    %c0_i32_1 = arith.constant 0 : i32
    return %c0_i32, %c0_i32_0 : i32, i32
  }
  func.func @transform_5(%arg0: i32, %arg1: i32) -> (i32, i32, i32) {
    %c0_i32 = arith.constant 0 : i32
    %c0_i32_0 = arith.constant 0 : i32
    return %arg0, %arg1, %c0_i32 : i32, i32, i32
  }
}

</mosaic_0001>

<llo_original>
// kernel: tpu_custom_call.1
$region0: #{tpu_custom_call.1}
  #allocation0 [shape = 'u32[]', space=smem, size = 0x4, offset = 0x4, fixed_abs, tag = 'smem constant byte address 0x4 - core index']
  #allocation1 [shape = 'u32[144,128]{1,0:T(1,128)}', space=vmem, size = 0x12000, scoped, tag = 'internal scratch']
  %s0 = inlined_call_operand.vmem [shape: bf16[2,256,152], index: 0, kind: input, shape index: {}]
  %s1 = inlined_call_operand.vmem [shape: bf16[152,64], index: 1, kind: input, shape index: {}]
  %s2 = inlined_call_operand.vmem [shape: f32[1,64], index: 2, kind: input, shape index: {}]
  %s3 = inlined_call_operand.vmem [shape: f32[1,64], index: 3, kind: input, shape index: {}]
  %s4 = inlined_call_operand.vmem [shape: f32[1,64], index: 4, kind: input, shape index: {}]
  %s5 = inlined_call_operand.vmem [shape: f32[2,256,64], index: 5, kind: output, shape index: {}]
  %s6 = sld [smem:[#allocation0]]
  $region53: #{tpu_custom_call.1} parent=0
    _
  %s8 = ssub.s32 1, %s6
  %s9 = scalar_select 0, %s8, %s6
  loop: start=0, step=1, limit=4
  $region2: #{tpu_custom_call.1} parent=0 // loop_pre_header
    _
  $region3: #{tpu_custom_call.1} parent=0 // loop_header
    %s11 = sphi 0, %s15
    %p12 = scmp.ge.s32.totalorder %s11, 4
    %s18 = sphi 0, %s30
    %s19 = sphi 0, %s26
    %s20 = sphi 0, %s18
    %s21 = sphi 0, %s19
    %s22 = sphi 0, %s20
    %s23 = sphi 0, %s21
    %s35 = sphi 0, %s37
    %s38 = sphi 0, %s35
    %s39 = sphi 0, %s38
    %s55 = sphi 0, %s39
    %s59 = sphi 0, %s59
    %s61 = sphi 0, %s59
    %s62 = sphi 0, %s61
    %s76 = sphi 0, %s62
    %s80 = sphi 0, %s80
    %s82 = sphi 0, %s80
    %s83 = sphi 0, %s82
    %s97 = sphi 0, %s83
    %s101 = sphi 0, %s101
    %s103 = sphi 0, %s101
    %s104 = sphi 0, %s103
    %s118 = sphi 0, %s104
    %s122 = sphi 0, %s122
    %s124 = sphi 0, %s122
    %s125 = sphi 0, %s124
    %s139 = sphi 0, %s125
    %s147 = sphi 0, %s149
    %s150 = sphi 0, %s147
    %s151 = sphi 0, %s150
    %s167 = sphi 0, %s151
  $region4: #{tpu_custom_call.1} parent=0 // loop_header_branch
    %14 = sbr.rel (%p12) target = $region8
  $region5: #{tpu_custom_call.1} parent=0 // loop_body
    %s16 = ssub.s32 %s11, 1
    %s17 = ssub.s32 %s11, 2
    %s24 = sadd.s32 1, %s19
    %p25 = scmp.ge.s32.totalorder %s24, 1
    %s26 = scalar_select %p25, 0, %s24
    %s27 = sadd.s32 1, %s18
    %s28 = scalar_select %p25, %s27, %s18
    %p29 = scmp.ge.s32.totalorder %s28, 2
    %s30 = scalar_select %p29, 0, %s28
    %s31 = ssub.s32 %s18, %s30
    %s32 = ssub.s32 %s19, %s26
    %s33 = sor.u32 %s31, %s32
    %p34 = scmp.eq.s32.totalorder %s33, 0
    %s36 = sadd.s32 %s35, 1
    %s37 = scalar_select %p34, %s35, %s36
    %p40 = pneg %p34
    %p41 = scmp.eq.s32.totalorder %s11, 1
    %p42 = por %p40, %p41
    %p43 = scmp.ne.s32.totalorder %s35, %s38
    %p44 = scmp.eq.s32.totalorder %s11, 0
    %p45 = por %p43, %p44
    %p46 = scmp.ne.s32.totalorder %s35, %s38
    %p47 = scmp.eq.s32.totalorder %s16, 1
    %p48 = por %p46, %p47
    %p49 = scmp.ne.s32.totalorder %s38, %s39
    %p50 = scmp.eq.s32.totalorder %s16, 0
    %p51 = por %p49, %p50
    %p52 = scmp.ne.s32.totalorder %s38, %s39
    %p53 = scmp.eq.s32.totalorder %s17, 1
    %p54 = por %p52, %p53
    %p56 = scmp.ne.s32.totalorder %s39, %s55
    %p57 = scmp.eq.s32.totalorder %s17, 0
    %p58 = por %p56, %p57
    %s60 = sadd.s32 %s59, 1
    %p63 = scmp.eq.s32.totalorder %s11, 1
    %p64 = scmp.ne.s32.totalorder %s59, %s61
    %p65 = scmp.eq.s32.totalorder %s11, 0
    %p66 = por %p64, %p65
    %p67 = scmp.ne.s32.totalorder %s59, %s61
    %p68 = scmp.eq.s32.totalorder %s16, 1
    %p69 = por %p67, %p68
    %p70 = scmp.ne.s32.totalorder %s61, %s62
    %p71 = scmp.eq.s32.totalorder %s16, 0
    %p72 = por %p70, %p71
    %p73 = scmp.ne.s32.totalorder %s61, %s62
    %p74 = scmp.eq.s32.totalorder %s17, 1
    %p75 = por %p73, %p74
    %p77 = scmp.ne.s32.totalorder %s62, %s76
    %p78 = scmp.eq.s32.totalorder %s17, 0
    %p79 = por %p77, %p78
    %s81 = sadd.s32 %s80, 1
    %p84 = scmp.eq.s32.totalorder %s11, 1
    %p85 = scmp.ne.s32.totalorder %s80, %s82
    %p86 = scmp.eq.s32.totalorder %s11, 0
    %p87 = por %p85, %p86
    %p88 = scmp.ne.s32.totalorder %s80, %s82
    %p89 = scmp.eq.s32.totalorder %s16, 1
    %p90 = por %p88, %p89
    %p91 = scmp.ne.s32.totalorder %s82, %s83
    %p92 = scmp.eq.s32.totalorder %s16, 0
    %p93 = por %p91, %p92
    %p94 = scmp.ne.s32.totalorder %s82, %s83
    %p95 = scmp.eq.s32.totalorder %s17, 1
    %p96 = por %p94, %p95
    %p98 = scmp.ne.s32.totalorder %s83, %s97
    %p99 = scmp.eq.s32.totalorder %s17, 0
    %p100 = por %p98, %p99
    %s102 = sadd.s32 %s101, 1
    %p105 = scmp.eq.s32.totalorder %s11, 1
    %p106 = scmp.ne.s32.totalorder %s101, %s103
    %p107 = scmp.eq.s32.totalorder %s11, 0
    %p108 = por %p106, %p107
    %p109 = scmp.ne.s32.totalorder %s101, %s103
    %p110 = scmp.eq.s32.totalorder %s16, 1
    %p111 = por %p109, %p110
    %p112 = scmp.ne.s32.totalorder %s103, %s104
    %p113 = scmp.eq.s32.totalorder %s16, 0
    %p114 = por %p112, %p113
    %p115 = scmp.ne.s32.totalorder %s103, %s104
    %p116 = scmp.eq.s32.totalorder %s17, 1
    %p117 = por %p115, %p116
    %p119 = scmp.ne.s32.totalorder %s104, %s118
    %p120 = scmp.eq.s32.totalorder %s17, 0
    %p121 = por %p119, %p120
    %s123 = sadd.s32 %s122, 1
    %p126 = scmp.eq.s32.totalorder %s11, 1
    %p127 = scmp.ne.s32.totalorder %s122, %s124
    %p128 = scmp.eq.s32.totalorder %s11, 0
    %p129 = por %p127, %p128
    %p130 = scmp.ne.s32.totalorder %s122, %s124
    %p131 = scmp.eq.s32.totalorder %s16, 1
    %p132 = por %p130, %p131
    %p133 = scmp.ne.s32.totalorder %s124, %s125
    %p134 = scmp.eq.s32.totalorder %s16, 0
    %p135 = por %p133, %p134
    %p136 = scmp.ne.s32.totalorder %s124, %s125
    %p137 = scmp.eq.s32.totalorder %s17, 1
    %p138 = por %p136, %p137
    %p140 = scmp.ne.s32.totalorder %s125, %s139
    %p141 = scmp.eq.s32.totalorder %s17, 0
    %p142 = por %p140, %p141
    %s143 = ssub.s32 %s18, %s30
    %s144 = ssub.s32 %s19, %s26
    %s145 = sor.u32 %s143, %s144
    %p146 = scmp.eq.s32.totalorder %s145, 0
    %s148 = sadd.s32 %s147, 1
    %s149 = scalar_select %p146, %s147, %s148
    %p152 = pneg %p146
    %p153 = scmp.eq.s32.totalorder %s11, 1
    %p154 = por %p152, %p153
    %p155 = scmp.ne.s32.totalorder %s147, %s150
    %p156 = scmp.eq.s32.totalorder %s11, 0
    %p157 = por %p155, %p156
    %p158 = scmp.ne.s32.totalorder %s147, %s150
    %p159 = scmp.eq.s32.totalorder %s16, 1
    %p160 = por %p158, %p159
    %p161 = scmp.ne.s32.totalorder %s150, %s151
    %p162 = scmp.eq.s32.totalorder %s16, 0
    %p163 = por %p161, %p162
    %p164 = scmp.ne.s32.totalorder %s150, %s151
    %p165 = scmp.eq.s32.totalorder %s17, 1
    %p166 = por %p164, %p165
    %p168 = scmp.ne.s32.totalorder %s151, %s167
    %p169 = scmp.eq.s32.totalorder %s17, 0
    %p170 = por %p168, %p169
    %p171 = scmp.le.s32.totalorder 1, %s11
    %p172 = scmp.lt.s32.totalorder %s11, 3
    %p173 = pnand %p171, %p172
    %p174 = pneg %p173
    // Predicated region
    $region9: #{tpu_custom_call.1} parent=5 // pred_check
      _
    $region10: #{tpu_custom_call.1} parent=5 // pred_check_branch
      %176 = sbr.rel (%p173) target = $region12
    $region11: #{tpu_custom_call.1} parent=5 // pred_region
      %s177 = ssub.s32 %s11, 1
      // Predicated region
      $region13: #{tpu_custom_call.1} parent=11 // pred_check
        %p178 = pneg %p72
      $region14: #{tpu_custom_call.1} parent=11 // pred_check_branch
        %180 = sbr.rel (%p178) target = $region16
      $region15: #{tpu_custom_call.1} parent=11 // pred_region
        _
      $region16: #{tpu_custom_call.1} parent=11 // pred_fallthru
        _
      // Predicated region
      $region17: #{tpu_custom_call.1} parent=11 // pred_check
        %p181 = pneg %p93
      $region18: #{tpu_custom_call.1} parent=11 // pred_check_branch
        %183 = sbr.rel (%p181) target = $region20
      $region19: #{tpu_custom_call.1} parent=11 // pred_region
        _
      $region20: #{tpu_custom_call.1} parent=11 // pred_fallthru
        _
      // Predicated region
      $region21: #{tpu_custom_call.1} parent=11 // pred_check
        %p184 = pneg %p114
      $region22: #{tpu_custom_call.1} parent=11 // pred_check_branch
        %186 = sbr.rel (%p184) target = $region24
      $region23: #{tpu_custom_call.1} parent=11 // pred_region
        _
      $region24: #{tpu_custom_call.1} parent=11 // pred_fallthru
        _
      // Predicated region
      $region25: #{tpu_custom_call.1} parent=11 // pred_check
        %p187 = pneg %p135
      $region26: #{tpu_custom_call.1} parent=11 // pred_check_branch
        %189 = sbr.rel (%p187) target = $region28
      $region27: #{tpu_custom_call.1} parent=11 // pred_region
        _
      $region28: #{tpu_custom_call.1} parent=11 // pred_fallthru
        _
    $region12: #{tpu_custom_call.1} parent=5 // pred_fallthru
      _
    %p190 = scmp.lt.s32.totalorder %s11, 2
    // Predicated region
    $region29: #{tpu_custom_call.1} parent=5 // pred_check
      %p191 = pneg %p190
    $region30: #{tpu_custom_call.1} parent=5 // pred_check_branch
      %193 = sbr.rel (%p191) target = $region32
    $region31: #{tpu_custom_call.1} parent=5 // pred_region
      // Predicated region
      $region33: #{tpu_custom_call.1} parent=31 // pred_check
        %p194 = pneg %p45
      $region34: #{tpu_custom_call.1} parent=31 // pred_check_branch
        %196 = sbr.rel (%p194) target = $region36
      $region35: #{tpu_custom_call.1} parent=31 // pred_region
        %s197 = smul.u32 32, %s19
        %p198 = scmp.lt.s32.totalorder %s18, 1
        %s199 = scalar_select %p198, %s18, 1
        %p200 = scmp.lt.s32.totalorder %s197, 31
        %s201 = scalar_select %p200, %s197, 31
        %s202 = smul.addr %s201, 2
        %s203 = smul.addr %s199, 64
        %s204 = sadd.s32 %s202, %s203
        %s205 = smul.addr %s204, 4
        %s206 = scalar_lea.vmem %s0, %s205
        %s207 = smul.u32 32, %s19
      $region36: #{tpu_custom_call.1} parent=31 // pred_fallthru
        _
    $region32: #{tpu_custom_call.1} parent=5 // pred_fallthru
      _
    %p208 = scmp.le.s32.totalorder 1, %s11
    %p209 = scmp.lt.s32.totalorder %s11, 3
    %p210 = pnand %p208, %p209
    %p211 = pneg %p210
    // Predicated region
    $region37: #{tpu_custom_call.1} parent=5 // pred_check
      _
    $region38: #{tpu_custom_call.1} parent=5 // pred_check_branch
      %213 = sbr.rel (%p210) target = $region40
    $region39: #{tpu_custom_call.1} parent=5 // pred_region
      %s214 = ssub.s32 %s11, 1
      %s215 = smul.u32 32, %s21
      %p216 = scmp.lt.s32.totalorder %s20, 1
      %s217 = scalar_select %p216, %s20, 1
      %p218 = scmp.lt.s32.totalorder %s215, 31
      %s219 = scalar_select %p218, %s215, 31
      %s220 = smul.addr %s219, 2
      %s221 = smul.addr %s217, 64
      %s222 = sadd.s32 %s220, %s221
      %s223 = smul.addr %s222, 4
      %s224 = scalar_lea.vmem %s0, %s223
      %p225 = pneg %p51
      %p226 = pneg %p48
      %p227 = pneg %p72
      %p228 = pneg %p69
      %p229 = pneg %p93
      %p230 = pneg %p90
      %p231 = pneg %p114
      %p232 = pneg %p111
      %p233 = pneg %p135
      %p234 = pneg %p132
      %p235 = pneg %p163
      %p236 = pneg %p160
      %s237 = smul.u32 32, %s21
      %p238 = scmp.lt.s32.totalorder %s20, 1
      %s239 = scalar_select %p238, %s20, 1
      %p240 = scmp.lt.s32.totalorder %s237, 31
      %s241 = scalar_select %p240, %s237, 31
      %s242 = smul.addr %s239, 32
      %s243 = sadd.s32 %s241, %s242
      %s244 = smul.addr %s243, 8
      %s245 = scalar_lea.vmem %s5, %s244
      %s246 = smul.u32 32, %s21
      %p247 = scmp.lt.s32.totalorder %s20, 1
      %s248 = scalar_select %p247, %s20, 1
      %p249 = scmp.lt.s32.totalorder %s246, 31
      %s250 = scalar_select %p249, %s246, 31
      %s251 = smul.addr %s250, 2
      %s252 = smul.addr %s248, 64
      %s253 = sadd.s32 %s251, %s252
      %s254 = smul.addr %s253, 4
      %s255 = scalar_lea.vmem %s0, %s254
      %s256 = smul.u32 32, %s21
      %s257 = smul.u32 32, %s21
      %p258 = scmp.lt.s32.totalorder %s20, 1
      %s259 = scalar_select %p258, %s20, 1
      %p260 = scmp.lt.s32.totalorder %s257, 31
      %s261 = scalar_select %p260, %s257, 31
      %s262 = smul.addr %s259, 32
      %s263 = sadd.s32 %s261, %s262
      %s264 = smul.addr %s263, 8
      %s265 = scalar_lea.vmem %s5, %s264
      %s266 = smul.u32 32, %s21
      %v268 = vld [vmem:[%s255] sm:$0xff]
      %v269 = vld [vmem:[%s255 + $0x8] sm:$0xff]
      %v270 = vld [vmem:[%s255 + $0x10] sm:$0xff]
      %v271 = vld [vmem:[%s255 + $0x18] sm:$0xff]
      %v272 = vld [vmem:[%s255 + $0x20] sm:$0xff]
      %v273 = vld [vmem:[%s255 + $0x28] sm:$0xff]
      %v274 = vld [vmem:[%s255 + $0x30] sm:$0xff]
      %v275 = vld [vmem:[%s255 + $0x38] sm:$0xff]
      %v276 = vld [vmem:[%s255 + $0x40] sm:$0xff]
      %v277 = vld [vmem:[%s255 + $0x48] sm:$0xff]
      %v278 = vld [vmem:[%s255 + $0x50] sm:$0xff]
      %v279 = vld [vmem:[%s255 + $0x58] sm:$0xff]
      %v280 = vld [vmem:[%s255 + $0x60] sm:$0xff]
      %v281 = vld [vmem:[%s255 + $0x68] sm:$0xff]
      %v282 = vld [vmem:[%s255 + $0x70] sm:$0xff]
      %v283 = vld [vmem:[%s255 + $0x78] sm:$0xff]
      %v284 = vld [vmem:[%s255 + $0x80] sm:$0xff]
      %v285 = vld [vmem:[%s255 + $0x88] sm:$0xff]
      %v286 = vld [vmem:[%s255 + $0x90] sm:$0xff]
      %v287 = vld [vmem:[%s255 + $0x98] sm:$0xff]
      %v288 = vld [vmem:[%s255 + $0xa0] sm:$0xff]
      %v289 = vld [vmem:[%s255 + $0xa8] sm:$0xff]
      %v290 = vld [vmem:[%s255 + $0xb0] sm:$0xff]
      %v291 = vld [vmem:[%s255 + $0xb8] sm:$0xff]
      %v292 = vld [vmem:[%s255 + $0xc0] sm:$0xff]
      %v293 = vld [vmem:[%s255 + $0xc8] sm:$0xff]
      %v294 = vld [vmem:[%s255 + $0xd0] sm:$0xff]
      %v295 = vld [vmem:[%s255 + $0xd8] sm:$0xff]
      %v296 = vld [vmem:[%s255 + $0xe0] sm:$0xff]
      %v297 = vld [vmem:[%s255 + $0xe8] sm:$0xff]
      %v298 = vld [vmem:[%s255 + $0xf0] sm:$0xff]
      %v299 = vld [vmem:[%s255 + $0xf8] sm:$0xff]
      %v300 = vld [vmem:[%s1] sm:$0xf]
      %v301 = vld [vmem:[%s1 + $0x4] sm:$0xf]
      %v302 = vld [vmem:[%s1 + $0x8] sm:$0xf]
      %v303 = vld [vmem:[%s1 + $0xc] sm:$0xf]
      %v304 = vld [vmem:[%s1 + $0x10] sm:$0xf]
      %v305 = vld [vmem:[%s1 + $0x14] sm:$0xf]
      %v306 = vld [vmem:[%s1 + $0x18] sm:$0xf]
      %v307 = vld [vmem:[%s1 + $0x1c] sm:$0xf]
      %v308 = vld [vmem:[%s1 + $0x20] sm:$0xf]
      %v309 = vld [vmem:[%s1 + $0x24] sm:$0xf]
      %v310 = vld [vmem:[%s1 + $0x28] sm:$0xf]
      %v311 = vld [vmem:[%s1 + $0x2c] sm:$0xf]
      %v312 = vld [vmem:[%s1 + $0x30] sm:$0xf]
      %v313 = vld [vmem:[%s1 + $0x34] sm:$0xf]
      %v314 = vld [vmem:[%s1 + $0x38] sm:$0xf]
      %v315 = vld [vmem:[%s1 + $0x3c] sm:$0xf]
      %v316 = vld [vmem:[%s1 + $0x40] sm:$0xf]
      %v317 = vld [vmem:[%s1 + $0x44] sm:$0xf]
      %v318 = vld [vmem:[%s1 + $0x48] sm:$0xf]
      %v319 = vld [vmem:[%s2] sm:$0x1]
      %v321 = vlaneseq
      %v322 = vshrl.u32 %v321, 7
      %v323 = vsub.s32 0, %v322
      %v324 = vrot.slane %v319, %v323
      %v358 = vunpack.c.l.b16 %v268
      %v359 = vunpack.c.h.b16 %v268
      %v360 = vunpack.c.l.b16 %v269
      %v361 = vunpack.c.h.b16 %v269
      %v362 = vunpack.c.l.b16 %v270
      %v363 = vunpack.c.h.b16 %v270
      %v364 = vunpack.c.l.b16 %v271
      %v365 = vunpack.c.h.b16 %v271
      %v366 = vunpack.c.l.b16 %v272
      %v367 = vunpack.c.h.b16 %v272
      %v368 = vunpack.c.l.b16 %v273
      %v369 = vunpack.c.h.b16 %v273
      %v370 = vunpack.c.l.b16 %v274
      %v371 = vunpack.c.h.b16 %v274
      %v372 = vunpack.c.l.b16 %v275
      %v373 = vunpack.c.h.b16 %v275
      %v374 = vunpack.c.l.b16 %v276
      %v375 = vunpack.c.h.b16 %v276
      %v376 = vunpack.c.l.b16 %v277
      %v377 = vunpack.c.h.b16 %v277
      %v378 = vunpack.c.l.b16 %v278
      %v379 = vunpack.c.h.b16 %v278
      %v380 = vunpack.c.l.b16 %v279
      %v381 = vunpack.c.h.b16 %v279
      %v382 = vunpack.c.l.b16 %v280
      %v383 = vunpack.c.h.b16 %v280
      %v384 = vunpack.c.l.b16 %v281
      %v385 = vunpack.c.h.b16 %v281
      %v386 = vunpack.c.l.b16 %v282
      %v387 = vunpack.c.h.b16 %v282
      %v388 = vunpack.c.l.b16 %v283
      %v389 = vunpack.c.h.b16 %v283
      %v390 = vunpack.c.l.b16 %v284
      %v391 = vunpack.c.h.b16 %v284
      %v392 = vunpack.c.l.b16 %v285
      %v393 = vunpack.c.h.b16 %v285
      %v394 = vunpack.c.l.b16 %v286
      %v395 = vunpack.c.h.b16 %v286
      %v396 = vunpack.c.l.b16 %v287
      %v397 = vunpack.c.h.b16 %v287
      %v398 = vunpack.c.l.b16 %v288
      %v399 = vunpack.c.h.b16 %v288
      %v400 = vunpack.c.l.b16 %v289
      %v401 = vunpack.c.h.b16 %v289
      %v402 = vunpack.c.l.b16 %v290
      %v403 = vunpack.c.h.b16 %v290
      %v404 = vunpack.c.l.b16 %v291
      %v405 = vunpack.c.h.b16 %v291
      %v406 = vunpack.c.l.b16 %v292
      %v407 = vunpack.c.h.b16 %v292
      %v408 = vunpack.c.l.b16 %v293
      %v409 = vunpack.c.h.b16 %v293
      %v410 = vunpack.c.l.b16 %v294
      %v411 = vunpack.c.h.b16 %v294
      %v412 = vunpack.c.l.b16 %v295
      %v413 = vunpack.c.h.b16 %v295
      %v414 = vunpack.c.l.b16 %v296
      %v415 = vunpack.c.h.b16 %v296
      %v416 = vunpack.c.l.b16 %v297
      %v417 = vunpack.c.h.b16 %v297
      %v418 = vunpack.c.l.b16 %v298
      %v419 = vunpack.c.h.b16 %v298
      %v420 = vunpack.c.l.b16 %v299
      %v421 = vunpack.c.h.b16 %v299
      %v422 = vpack.c.b16 %v360, %v358
      %v423 = vpack.c.b16 %v361, %v359
      %v424 = vpack.c.b16 %v364, %v362
      %v425 = vpack.c.b16 %v365, %v363
      %v426 = vpack.c.b16 %v368, %v366
      %v427 = vpack.c.b16 %v369, %v367
      %v428 = vpack.c.b16 %v372, %v370
      %v429 = vpack.c.b16 %v373, %v371
      %v430 = vpack.c.b16 %v376, %v374
      %v431 = vpack.c.b16 %v377, %v375
      %v432 = vpack.c.b16 %v380, %v378
      %v433 = vpack.c.b16 %v381, %v379
      %v434 = vpack.c.b16 %v384, %v382
      %v435 = vpack.c.b16 %v385, %v383
      %v436 = vpack.c.b16 %v388, %v386
      %v437 = vpack.c.b16 %v389, %v387
      %v438 = vpack.c.b16 %v392, %v390
      %v439 = vpack.c.b16 %v393, %v391
      %v440 = vpack.c.b16 %v396, %v394
      %v441 = vpack.c.b16 %v397, %v395
      %v442 = vpack.c.b16 %v400, %v398
      %v443 = vpack.c.b16 %v401, %v399
      %v444 = vpack.c.b16 %v404, %v402
      %v445 = vpack.c.b16 %v405, %v403
      %v446 = vpack.c.b16 %v408, %v406
      %v447 = vpack.c.b16 %v409, %v407
      %v448 = vpack.c.b16 %v412, %v410
      %v449 = vpack.c.b16 %v413, %v411
      %v450 = vpack.c.b16 %v416, %v414
      %v451 = vpack.c.b16 %v417, %v415
      %v452 = vpack.c.b16 %v420, %v418
      %v453 = vpack.c.b16 %v421, %v419
      %v489 = vunpack.c.l.b16 %v300
      %v490 = vunpack.c.l.b16 %v301
      %v491 = vunpack.c.l.b16 %v302
      %v492 = vunpack.c.l.b16 %v303
      %v493 = vunpack.c.l.b16 %v304
      %v494 = vunpack.c.l.b16 %v305
      %v495 = vunpack.c.l.b16 %v306
      %v496 = vunpack.c.l.b16 %v307
      %v497 = vunpack.c.l.b16 %v308
      %v498 = vunpack.c.l.b16 %v309
      %v499 = vunpack.c.l.b16 %v310
      %v500 = vunpack.c.l.b16 %v311
      %v501 = vunpack.c.l.b16 %v312
      %v502 = vunpack.c.l.b16 %v313
      %v503 = vunpack.c.l.b16 %v314
      %v504 = vunpack.c.l.b16 %v315
      %v505 = vunpack.c.l.b16 %v316
      %v506 = vunpack.c.l.b16 %v317
      %v507 = vunpack.c.l.b16 %v318
      %v508 = vpack.c.b16 %v490, %v489
      %v509 = vpack.c.b16 %v492, %v491
      %v510 = vpack.c.b16 %v494, %v493
      %v511 = vpack.c.b16 %v496, %v495
      %v512 = vpack.c.b16 %v498, %v497
      %v513 = vpack.c.b16 %v500, %v499
      %v514 = vpack.c.b16 %v502, %v501
      %v515 = vpack.c.b16 %v504, %v503
      %v516 = vpack.c.b16 %v506, %v505
      %v517 = vpack.c.b16 %v507, %v507
      %vm527 = vcmask 195584
      %v529 = vsel %vm527, %v423, 0
      %v532 = vsel %vm527, %v425, 0
      %v535 = vsel %vm527, %v427, 0
      %v538 = vsel %vm527, %v429, 0
      %v541 = vsel %vm527, %v431, 0
      %v544 = vsel %vm527, %v433, 0
      %v547 = vsel %vm527, %v435, 0
      %v550 = vsel %vm527, %v437, 0
      %v553 = vsel %vm527, %v439, 0
      %v556 = vsel %vm527, %v441, 0
      %v559 = vsel %vm527, %v443, 0
      %v562 = vsel %vm527, %v445, 0
      %v565 = vsel %vm527, %v447, 0
      %v568 = vsel %vm527, %v449, 0
      %v571 = vsel %vm527, %v451, 0
      %v574 = vsel %vm527, %v453, 0
      %vm576 = vcmask 1043456
      %v578 = vsel %vm576, %v517, 0
      %580 = vmatprep.subr.bf16.mxu0 0
      %581 = vmatpush1.bf16.msra.mxu0 %v515
      %582 = vmatprep.subr.bf16.mxu0 0
      %583 = vmatpush1.bf16.msra.mxu0 %v514
      %584 = vmatprep.subr.bf16.mxu0 0
      %585 = vmatpush1.bf16.msra.mxu0 %v513
      %586 = vmatprep.subr.bf16.mxu0 0
      %587 = vmatpush1.bf16.msra.mxu0 %v512
      %588 = vmatprep.subr.bf16.mxu0 0
      %589 = vmatpush1.bf16.msra.mxu0 %v511
      %590 = vmatprep.subr.bf16.mxu0 0
      %591 = vmatpush1.bf16.msra.mxu0 %v510
      %592 = vmatprep.subr.bf16.mxu0 0
      %593 = vmatpush1.bf16.msra.mxu0 %v509
      %594 = vmatprep.subr.bf16.mxu0 0
      %595 = vmatpush1.bf16.msra.mxu0 %v508
      %596 = vmatprep.subr.bf16.mxu0 0
      %597 = vmatpush2.bf16.msra.mxu0 0
      %598 = vmatprep.subr.bf16.mxu0 0
      %599 = vmatpush2.bf16.msra.mxu0 0
      %600 = vmatprep.subr.bf16.mxu0 0
      %601 = vmatpush2.bf16.msra.mxu0 0
      %602 = vmatprep.subr.bf16.mxu0 0
      %603 = vmatpush2.bf16.msra.mxu0 0
      %604 = vmatprep.subr.bf16.mxu0 0
      %605 = vmatpush2.bf16.msra.mxu0 0
      %606 = vmatprep.subr.bf16.mxu0 0
      %607 = vmatpush2.bf16.msra.mxu0 0
      %608 = vmatprep.subr.bf16.mxu0 0
      %609 = vmatpush2.bf16.msra.mxu0 %v578
      %610 = vmatprep.subr.bf16.mxu0 0
      %611 = vmatpush2.bf16.msra.mxu0 %v516
      %612 = vmatprep.mubr.bf16.mxu0 %v529
      %613 = vmatmul.mubr.bf16.gmra.mxu0 %v422
      %v614 = vpop.f32.mrf.mxu0
      %v615 = vadd.f32 %v324, %v614
      %v616 = vpop.f32.mrf.mxu0
      %v617 = vpop.f32.mrf.mxu0
      %v618 = vadd.f32 %v324, %v617
      %v619 = vpop.f32.mrf.mxu0
      %620 = vmatprep.mubr.bf16.mxu0 %v532
      %621 = vmatmul.mubr.bf16.gmra.mxu0 %v424
      %v622 = vpop.f32.mrf.mxu0
      %v623 = vadd.f32 %v324, %v622
      %v624 = vpop.f32.mrf.mxu0
      %v625 = vpop.f32.mrf.mxu0
      %v626 = vadd.f32 %v324, %v625
      %v627 = vpop.f32.mrf.mxu0
      %628 = vmatprep.mubr.bf16.mxu0 %v535
      %629 = vmatmul.mubr.bf16.gmra.mxu0 %v426
      %v630 = vpop.f32.mrf.mxu0
      %v631 = vadd.f32 %v324, %v630
      %v632 = vpop.f32.mrf.mxu0
      %v633 = vpop.f32.mrf.mxu0
      %v634 = vadd.f32 %v324, %v633
      %v635 = vpop.f32.mrf.mxu0
      %636 = vmatprep.mubr.bf16.mxu0 %v538
      %637 = vmatmul.mubr.bf16.gmra.mxu0 %v428
      %v638 = vpop.f32.mrf.mxu0
      %v639 = vadd.f32 %v324, %v638
      %v640 = vpop.f32.mrf.mxu0
      %v641 = vpop.f32.mrf.mxu0
      %v642 = vadd.f32 %v324, %v641
      %v643 = vpop.f32.mrf.mxu0
      %644 = vmatprep.mubr.bf16.mxu0 %v541
      %645 = vmatmul.mubr.bf16.gmra.mxu0 %v430
      %v646 = vpop.f32.mrf.mxu0
      %v647 = vadd.f32 %v324, %v646
      %v648 = vpop.f32.mrf.mxu0
      %v649 = vpop.f32.mrf.mxu0
      %v650 = vadd.f32 %v324, %v649
      %v651 = vpop.f32.mrf.mxu0
      %652 = vmatprep.mubr.bf16.mxu0 %v544
      %653 = vmatmul.mubr.bf16.gmra.mxu0 %v432
      %v654 = vpop.f32.mrf.mxu0
      %v655 = vadd.f32 %v324, %v654
      %v656 = vpop.f32.mrf.mxu0
      %v657 = vpop.f32.mrf.mxu0
      %v658 = vadd.f32 %v324, %v657
      %v659 = vpop.f32.mrf.mxu0
      %660 = vmatprep.mubr.bf16.mxu0 %v547
      %661 = vmatmul.mubr.bf16.gmra.mxu0 %v434
      %v662 = vpop.f32.mrf.mxu0
      %v663 = vadd.f32 %v324, %v662
      %v664 = vpop.f32.mrf.mxu0
      %v665 = vpop.f32.mrf.mxu0
      %v666 = vadd.f32 %v324, %v665
      %v667 = vpop.f32.mrf.mxu0
      %668 = vmatprep.mubr.bf16.mxu0 %v550
      %669 = vmatmul.mubr.bf16.gmra.mxu0 %v436
      %v670 = vpop.f32.mrf.mxu0
      %v671 = vadd.f32 %v324, %v670
      %v672 = vpop.f32.mrf.mxu0
      %v673 = vpop.f32.mrf.mxu0
      %v674 = vadd.f32 %v324, %v673
      %v675 = vpop.f32.mrf.mxu0
      %676 = vmatprep.mubr.bf16.mxu0 %v553
      %677 = vmatmul.mubr.bf16.gmra.mxu0 %v438
      %v678 = vpop.f32.mrf.mxu0
      %v679 = vadd.f32 %v324, %v678
      %v680 = vpop.f32.mrf.mxu0
      %v681 = vpop.f32.mrf.mxu0
      %v682 = vadd.f32 %v324, %v681
      %v683 = vpop.f32.mrf.mxu0
      %684 = vmatprep.mubr.bf16.mxu0 %v556
      %685 = vmatmul.mubr.bf16.gmra.mxu0 %v440
      %v686 = vpop.f32.mrf.mxu0
      %v687 = vadd.f32 %v324, %v686
      %v688 = vpop.f32.mrf.mxu0
      %v689 = vpop.f32.mrf.mxu0
      %v690 = vadd.f32 %v324, %v689
      %v691 = vpop.f32.mrf.mxu0
      %692 = vmatprep.mubr.bf16.mxu0 %v559
      %693 = vmatmul.mubr.bf16.gmra.mxu0 %v442
      %v694 = vpop.f32.mrf.mxu0
      %v695 = vadd.f32 %v324, %v694
      %v696 = vpop.f32.mrf.mxu0
      %v697 = vpop.f32.mrf.mxu0
      %v698 = vadd.f32 %v324, %v697
      %v699 = vpop.f32.mrf.mxu0
      %700 = vmatprep.mubr.bf16.mxu0 %v562
      %701 = vmatmul.mubr.bf16.gmra.mxu0 %v444
      %v702 = vpop.f32.mrf.mxu0
      %v703 = vadd.f32 %v324, %v702
      %v704 = vpop.f32.mrf.mxu0
      %v705 = vpop.f32.mrf.mxu0
      %v706 = vadd.f32 %v324, %v705
      %v707 = vpop.f32.mrf.mxu0
      %708 = vmatprep.mubr.bf16.mxu0 %v565
      %709 = vmatmul.mubr.bf16.gmra.mxu0 %v446
      %v710 = vpop.f32.mrf.mxu0
      %v711 = vadd.f32 %v324, %v710
      %v712 = vpop.f32.mrf.mxu0
      %v713 = vpop.f32.mrf.mxu0
      %v714 = vadd.f32 %v324, %v713
      %v715 = vpop.f32.mrf.mxu0
      %716 = vmatprep.mubr.bf16.mxu0 %v568
      %717 = vmatmul.mubr.bf16.gmra.mxu0 %v448
      %v718 = vpop.f32.mrf.mxu0
      %v719 = vadd.f32 %v324, %v718
      %v720 = vpop.f32.mrf.mxu0
      %v721 = vpop.f32.mrf.mxu0
      %v722 = vadd.f32 %v324, %v721
      %v723 = vpop.f32.mrf.mxu0
      %724 = vmatprep.mubr.bf16.mxu0 %v571
      %725 = vmatmul.mubr.bf16.gmra.mxu0 %v450
      %v726 = vpop.f32.mrf.mxu0
      %v727 = vadd.f32 %v324, %v726
      %v728 = vpop.f32.mrf.mxu0
      %v729 = vpop.f32.mrf.mxu0
      %v730 = vadd.f32 %v324, %v729
      %v731 = vpop.f32.mrf.mxu0
      %732 = vmatprep.mubr.bf16.mxu0 %v574
      %733 = vmatmul.mubr.bf16.gmra.mxu0 %v452
      %v734 = vpop.f32.mrf.mxu0
      %v735 = vadd.f32 %v324, %v734
      %v736 = vpop.f32.mrf.mxu0
      %v737 = vpop.f32.mrf.mxu0
      %v738 = vadd.f32 %v324, %v737
      %v739 = vpop.f32.mrf.mxu0
      %740 = vdwg.mxu0
      %vm741 = vcmask 523264
      %v742 = vsel %vm741, %v615, 0.0
      %743 = vadd.xlane.f32.xlu0 %v742
      %v744 = vpop.xlane.xlu0 %743
      %v745 = vsel %vm741, %v618, 0.0
      %746 = vadd.xlane.f32.xlu0 %v745
      %v747 = vpop.xlane.xlu0 %746
      %v748 = vsel %vm741, %v623, 0.0
      %749 = vadd.xlane.f32.xlu0 %v748
      %v750 = vpop.xlane.xlu0 %749
      %v751 = vsel %vm741, %v626, 0.0
      %752 = vadd.xlane.f32.xlu0 %v751
      %v753 = vpop.xlane.xlu0 %752
      %v754 = vsel %vm741, %v631, 0.0
      %755 = vadd.xlane.f32.xlu0 %v754
      %v756 = vpop.xlane.xlu0 %755
      %v757 = vsel %vm741, %v634, 0.0
      %758 = vadd.xlane.f32.xlu0 %v757
      %v759 = vpop.xlane.xlu0 %758
      %v760 = vsel %vm741, %v639, 0.0
      %761 = vadd.xlane.f32.xlu0 %v760
      %v762 = vpop.xlane.xlu0 %761
      %v763 = vsel %vm741, %v642, 0.0
      %764 = vadd.xlane.f32.xlu0 %v763
      %v765 = vpop.xlane.xlu0 %764
      %v766 = vsel %vm741, %v647, 0.0
      %767 = vadd.xlane.f32.xlu0 %v766
      %v768 = vpop.xlane.xlu0 %767
      %v769 = vsel %vm741, %v650, 0.0
      %770 = vadd.xlane.f32.xlu0 %v769
      %v771 = vpop.xlane.xlu0 %770
      %v772 = vsel %vm741, %v655, 0.0
      %773 = vadd.xlane.f32.xlu0 %v772
      %v774 = vpop.xlane.xlu0 %773
      %v775 = vsel %vm741, %v658, 0.0
      %776 = vadd.xlane.f32.xlu0 %v775
      %v777 = vpop.xlane.xlu0 %776
      %v778 = vsel %vm741, %v663, 0.0
      %779 = vadd.xlane.f32.xlu0 %v778
      %v780 = vpop.xlane.xlu0 %779
      %v781 = vsel %vm741, %v666, 0.0
      %782 = vadd.xlane.f32.xlu0 %v781
      %v783 = vpop.xlane.xlu0 %782
      %v784 = vsel %vm741, %v671, 0.0
      %785 = vadd.xlane.f32.xlu0 %v784
      %v786 = vpop.xlane.xlu0 %785
      %v787 = vsel %vm741, %v674, 0.0
      %788 = vadd.xlane.f32.xlu0 %v787
      %v789 = vpop.xlane.xlu0 %788
      %v790 = vsel %vm741, %v679, 0.0
      %791 = vadd.xlane.f32.xlu0 %v790
      %v792 = vpop.xlane.xlu0 %791
      %v793 = vsel %vm741, %v682, 0.0
      %794 = vadd.xlane.f32.xlu0 %v793
      %v795 = vpop.xlane.xlu0 %794
      %v796 = vsel %vm741, %v687, 0.0
      %797 = vadd.xlane.f32.xlu0 %v796
      %v798 = vpop.xlane.xlu0 %797
      %v799 = vsel %vm741, %v690, 0.0
      %800 = vadd.xlane.f32.xlu0 %v799
      %v801 = vpop.xlane.xlu0 %800
      %v802 = vsel %vm741, %v695, 0.0
      %803 = vadd.xlane.f32.xlu0 %v802
      %v804 = vpop.xlane.xlu0 %803
      %v805 = vsel %vm741, %v698, 0.0
      %806 = vadd.xlane.f32.xlu0 %v805
      %v807 = vpop.xlane.xlu0 %806
      %v808 = vsel %vm741, %v703, 0.0
      %809 = vadd.xlane.f32.xlu0 %v808
      %v810 = vpop.xlane.xlu0 %809
      %v811 = vsel %vm741, %v706, 0.0
      %812 = vadd.xlane.f32.xlu0 %v811
      %v813 = vpop.xlane.xlu0 %812
      %v814 = vsel %vm741, %v711, 0.0
      %815 = vadd.xlane.f32.xlu0 %v814
      %v816 = vpop.xlane.xlu0 %815
      %v817 = vsel %vm741, %v714, 0.0
      %818 = vadd.xlane.f32.xlu0 %v817
      %v819 = vpop.xlane.xlu0 %818
      %v820 = vsel %vm741, %v719, 0.0
      %821 = vadd.xlane.f32.xlu0 %v820
      %v822 = vpop.xlane.xlu0 %821
      %v823 = vsel %vm741, %v722, 0.0
      %824 = vadd.xlane.f32.xlu0 %v823
      %v825 = vpop.xlane.xlu0 %824
      %v826 = vsel %vm741, %v727, 0.0
      %827 = vadd.xlane.f32.xlu0 %v826
      %v828 = vpop.xlane.xlu0 %827
      %v829 = vsel %vm741, %v730, 0.0
      %830 = vadd.xlane.f32.xlu0 %v829
      %v831 = vpop.xlane.xlu0 %830
      %v832 = vsel %vm741, %v735, 0.0
      %833 = vadd.xlane.f32.xlu0 %v832
      %v834 = vpop.xlane.xlu0 %833
      %v835 = vsel %vm741, %v738, 0.0
      %836 = vadd.xlane.f32.xlu0 %v835
      %v837 = vpop.xlane.xlu0 %836
      %v838 = vmul.f32 %v744, 0.015625
      %v839 = vmul.f32 %v747, 0.015625
      %v840 = vmul.f32 %v750, 0.015625
      %v841 = vmul.f32 %v753, 0.015625
      %v842 = vmul.f32 %v756, 0.015625
      %v843 = vmul.f32 %v759, 0.015625
      %v844 = vmul.f32 %v762, 0.015625
      %v845 = vmul.f32 %v765, 0.015625
      %v846 = vmul.f32 %v768, 0.015625
      %v847 = vmul.f32 %v771, 0.015625
      %v848 = vmul.f32 %v774, 0.015625
      %v849 = vmul.f32 %v777, 0.015625
      %v850 = vmul.f32 %v780, 0.015625
      %v851 = vmul.f32 %v783, 0.015625
      %v852 = vmul.f32 %v786, 0.015625
      %v853 = vmul.f32 %v789, 0.015625
      %v854 = vmul.f32 %v792, 0.015625
      %v855 = vmul.f32 %v795, 0.015625
      %v856 = vmul.f32 %v798, 0.015625
      %v857 = vmul.f32 %v801, 0.015625
      %v858 = vmul.f32 %v804, 0.015625
      %v859 = vmul.f32 %v807, 0.015625
      %v860 = vmul.f32 %v810, 0.015625
      %v861 = vmul.f32 %v813, 0.015625
      %v862 = vmul.f32 %v816, 0.015625
      %v863 = vmul.f32 %v819, 0.015625
      %v864 = vmul.f32 %v822, 0.015625
      %v865 = vmul.f32 %v825, 0.015625
      %v866 = vmul.f32 %v828, 0.015625
      %v867 = vmul.f32 %v831, 0.015625
      %v868 = vmul.f32 %v834, 0.015625
      %v869 = vmul.f32 %v837, 0.015625
      %v870 = vmul.f32 %v615, %v615
      %v871 = vmul.f32 %v618, %v618
      %v872 = vmul.f32 %v623, %v623
      %v873 = vmul.f32 %v626, %v626
      %v874 = vmul.f32 %v631, %v631
      %v875 = vmul.f32 %v634, %v634
      %v876 = vmul.f32 %v639, %v639
      %v877 = vmul.f32 %v642, %v642
      %v878 = vmul.f32 %v647, %v647
      %v879 = vmul.f32 %v650, %v650
      %v880 = vmul.f32 %v655, %v655
      %v881 = vmul.f32 %v658, %v658
      %v882 = vmul.f32 %v663, %v663
      %v883 = vmul.f32 %v666, %v666
      %v884 = vmul.f32 %v671, %v671
      %v885 = vmul.f32 %v674, %v674
      %v886 = vmul.f32 %v679, %v679
      %v887 = vmul.f32 %v682, %v682
      %v888 = vmul.f32 %v687, %v687
      %v889 = vmul.f32 %v690, %v690
      %v890 = vmul.f32 %v695, %v695
      %v891 = vmul.f32 %v698, %v698
      %v892 = vmul.f32 %v703, %v703
      %v893 = vmul.f32 %v706, %v706
      %v894 = vmul.f32 %v711, %v711
      %v895 = vmul.f32 %v714, %v714
      %v896 = vmul.f32 %v719, %v719
      %v897 = vmul.f32 %v722, %v722
      %v898 = vmul.f32 %v727, %v727
      %v899 = vmul.f32 %v730, %v730
      %v900 = vmul.f32 %v735, %v735
      %v901 = vmul.f32 %v738, %v738
      %v902 = vsel %vm741, %v870, 0.0
      %903 = vadd.xlane.f32.xlu0 %v902
      %v904 = vpop.xlane.xlu0 %903
      %v905 = vsel %vm741, %v871, 0.0
      %906 = vadd.xlane.f32.xlu0 %v905
      %v907 = vpop.xlane.xlu0 %906
      %v908 = vsel %vm741, %v872, 0.0
      %909 = vadd.xlane.f32.xlu0 %v908
      %v910 = vpop.xlane.xlu0 %909
      %v911 = vsel %vm741, %v873, 0.0
      %912 = vadd.xlane.f32.xlu0 %v911
      %v913 = vpop.xlane.xlu0 %912
      %v914 = vsel %vm741, %v874, 0.0
      %915 = vadd.xlane.f32.xlu0 %v914
      %v916 = vpop.xlane.xlu0 %915
      %v917 = vsel %vm741, %v875, 0.0
      %918 = vadd.xlane.f32.xlu0 %v917
      %v919 = vpop.xlane.xlu0 %918
      %v920 = vsel %vm741, %v876, 0.0
      %921 = vadd.xlane.f32.xlu0 %v920
      %v922 = vpop.xlane.xlu0 %921
      %v923 = vsel %vm741, %v877, 0.0
      %924 = vadd.xlane.f32.xlu0 %v923
      %v925 = vpop.xlane.xlu0 %924
      %v926 = vsel %vm741, %v878, 0.0
      %927 = vadd.xlane.f32.xlu0 %v926
      %v928 = vpop.xlane.xlu0 %927
      %v929 = vsel %vm741, %v879, 0.0
      %930 = vadd.xlane.f32.xlu0 %v929
      %v931 = vpop.xlane.xlu0 %930
      %v932 = vsel %vm741, %v880, 0.0
      %933 = vadd.xlane.f32.xlu0 %v932
      %v934 = vpop.xlane.xlu0 %933
      %v935 = vsel %vm741, %v881, 0.0
      %936 = vadd.xlane.f32.xlu0 %v935
      %v937 = vpop.xlane.xlu0 %936
      %v938 = vsel %vm741, %v882, 0.0
      %939 = vadd.xlane.f32.xlu0 %v938
      %v940 = vpop.xlane.xlu0 %939
      %v941 = vsel %vm741, %v883, 0.0
      %942 = vadd.xlane.f32.xlu0 %v941
      %v943 = vpop.xlane.xlu0 %942
      %v944 = vsel %vm741, %v884, 0.0
      %945 = vadd.xlane.f32.xlu0 %v944
      %v946 = vpop.xlane.xlu0 %945
      %v947 = vsel %vm741, %v885, 0.0
      %948 = vadd.xlane.f32.xlu0 %v947
      %v949 = vpop.xlane.xlu0 %948
      %v950 = vsel %vm741, %v886, 0.0
      %951 = vadd.xlane.f32.xlu0 %v950
      %v952 = vpop.xlane.xlu0 %951
      %v953 = vsel %vm741, %v887, 0.0
      %954 = vadd.xlane.f32.xlu0 %v953
      %v955 = vpop.xlane.xlu0 %954
      %v956 = vsel %vm741, %v888, 0.0
      %957 = vadd.xlane.f32.xlu0 %v956
      %v958 = vpop.xlane.xlu0 %957
      %v959 = vsel %vm741, %v889, 0.0
      %960 = vadd.xlane.f32.xlu0 %v959
      %v961 = vpop.xlane.xlu0 %960
      %v962 = vsel %vm741, %v890, 0.0
      %963 = vadd.xlane.f32.xlu0 %v962
      %v964 = vpop.xlane.xlu0 %963
      %v965 = vsel %vm741, %v891, 0.0
      %966 = vadd.xlane.f32.xlu0 %v965
      %v967 = vpop.xlane.xlu0 %966
      %v968 = vsel %vm741, %v892, 0.0
      %969 = vadd.xlane.f32.xlu0 %v968
      %v970 = vpop.xlane.xlu0 %969
      %v971 = vsel %vm741, %v893, 0.0
      %972 = vadd.xlane.f32.xlu0 %v971
      %v973 = vpop.xlane.xlu0 %972
      %v974 = vsel %vm741, %v894, 0.0
      %975 = vadd.xlane.f32.xlu0 %v974
      %v976 = vpop.xlane.xlu0 %975
      %v977 = vsel %vm741, %v895, 0.0
      %978 = vadd.xlane.f32.xlu0 %v977
      %v979 = vpop.xlane.xlu0 %978
      %v980 = vsel %vm741, %v896, 0.0
      %981 = vadd.xlane.f32.xlu0 %v980
      %v982 = vpop.xlane.xlu0 %981
      %v983 = vsel %vm741, %v897, 0.0
      %984 = vadd.xlane.f32.xlu0 %v983
      %v985 = vpop.xlane.xlu0 %984
      %v986 = vsel %vm741, %v898, 0.0
      %987 = vadd.xlane.f32.xlu0 %v986
      %v988 = vpop.xlane.xlu0 %987
      %v989 = vsel %vm741, %v899, 0.0
      %990 = vadd.xlane.f32.xlu0 %v989
      %v991 = vpop.xlane.xlu0 %990
      %v992 = vsel %vm741, %v900, 0.0
      %993 = vadd.xlane.f32.xlu0 %v992
      %v994 = vpop.xlane.xlu0 %993
      %v995 = vsel %vm741, %v901, 0.0
      %996 = vadd.xlane.f32.xlu0 %v995
      %v997 = vpop.xlane.xlu0 %996
      %v998 = vmul.f32 %v904, 0.015625
      %v999 = vmul.f32 %v907, 0.015625
      %v1000 = vmul.f32 %v910, 0.015625
      %v1001 = vmul.f32 %v913, 0.015625
      %v1002 = vmul.f32 %v916, 0.015625
      %v1003 = vmul.f32 %v919, 0.015625
      %v1004 = vmul.f32 %v922, 0.015625
      %v1005 = vmul.f32 %v925, 0.015625
      %v1006 = vmul.f32 %v928, 0.015625
      %v1007 = vmul.f32 %v931, 0.015625
      %v1008 = vmul.f32 %v934, 0.015625
      %v1009 = vmul.f32 %v937, 0.015625
      %v1010 = vmul.f32 %v940, 0.015625
      %v1011 = vmul.f32 %v943, 0.015625
      %v1012 = vmul.f32 %v946, 0.015625
      %v1013 = vmul.f32 %v949, 0.015625
      %v1014 = vmul.f32 %v952, 0.015625
      %v1015 = vmul.f32 %v955, 0.015625
      %v1016 = vmul.f32 %v958, 0.015625
      %v1017 = vmul.f32 %v961, 0.015625
      %v1018 = vmul.f32 %v964, 0.015625
      %v1019 = vmul.f32 %v967, 0.015625
      %v1020 = vmul.f32 %v970, 0.015625
      %v1021 = vmul.f32 %v973, 0.015625
      %v1022 = vmul.f32 %v976, 0.015625
      %v1023 = vmul.f32 %v979, 0.015625
      %v1024 = vmul.f32 %v982, 0.015625
      %v1025 = vmul.f32 %v985, 0.015625
      %v1026 = vmul.f32 %v988, 0.015625
      %v1027 = vmul.f32 %v991, 0.015625
      %v1028 = vmul.f32 %v994, 0.015625
      %v1029 = vmul.f32 %v997, 0.015625
      %v1030 = vmul.f32 %v838, %v838
      %v1031 = vmul.f32 %v839, %v839
      %v1032 = vmul.f32 %v840, %v840
      %v1033 = vmul.f32 %v841, %v841
      %v1034 = vmul.f32 %v842, %v842
      %v1035 = vmul.f32 %v843, %v843
      %v1036 = vmul.f32 %v844, %v844
      %v1037 = vmul.f32 %v845, %v845
      %v1038 = vmul.f32 %v846, %v846
      %v1039 = vmul.f32 %v847, %v847
      %v1040 = vmul.f32 %v848, %v848
      %v1041 = vmul.f32 %v849, %v849
      %v1042 = vmul.f32 %v850, %v850
      %v1043 = vmul.f32 %v851, %v851
      %v1044 = vmul.f32 %v852, %v852
      %v1045 = vmul.f32 %v853, %v853
      %v1046 = vmul.f32 %v854, %v854
      %v1047 = vmul.f32 %v855, %v855
      %v1048 = vmul.f32 %v856, %v856
      %v1049 = vmul.f32 %v857, %v857
      %v1050 = vmul.f32 %v858, %v858
      %v1051 = vmul.f32 %v859, %v859
      %v1052 = vmul.f32 %v860, %v860
      %v1053 = vmul.f32 %v861, %v861
      %v1054 = vmul.f32 %v862, %v862
      %v1055 = vmul.f32 %v863, %v863
      %v1056 = vmul.f32 %v864, %v864
      %v1057 = vmul.f32 %v865, %v865
      %v1058 = vmul.f32 %v866, %v866
      %v1059 = vmul.f32 %v867, %v867
      %v1060 = vmul.f32 %v868, %v868
      %v1061 = vmul.f32 %v869, %v869
      %v1062 = vsub.f32 %v998, %v1030
      %v1063 = vsub.f32 %v999, %v1031
      %v1064 = vsub.f32 %v1000, %v1032
      %v1065 = vsub.f32 %v1001, %v1033
      %v1066 = vsub.f32 %v1002, %v1034
      %v1067 = vsub.f32 %v1003, %v1035
      %v1068 = vsub.f32 %v1004, %v1036
      %v1069 = vsub.f32 %v1005, %v1037
      %v1070 = vsub.f32 %v1006, %v1038
      %v1071 = vsub.f32 %v1007, %v1039
      %v1072 = vsub.f32 %v1008, %v1040
      %v1073 = vsub.f32 %v1009, %v1041
      %v1074 = vsub.f32 %v1010, %v1042
      %v1075 = vsub.f32 %v1011, %v1043
      %v1076 = vsub.f32 %v1012, %v1044
      %v1077 = vsub.f32 %v1013, %v1045
      %v1078 = vsub.f32 %v1014, %v1046
      %v1079 = vsub.f32 %v1015, %v1047
      %v1080 = vsub.f32 %v1016, %v1048
      %v1081 = vsub.f32 %v1017, %v1049
      %v1082 = vsub.f32 %v1018, %v1050
      %v1083 = vsub.f32 %v1019, %v1051
      %v1084 = vsub.f32 %v1020, %v1052
      %v1085 = vsub.f32 %v1021, %v1053
      %v1086 = vsub.f32 %v1022, %v1054
      %v1087 = vsub.f32 %v1023, %v1055
      %v1088 = vsub.f32 %v1024, %v1056
      %v1089 = vsub.f32 %v1025, %v1057
      %v1090 = vsub.f32 %v1026, %v1058
      %v1091 = vsub.f32 %v1027, %v1059
      %v1092 = vsub.f32 %v1028, %v1060
      %v1093 = vsub.f32 %v1029, %v1061
      %v1094 = vmax.f32 %v1062, 0.0
      %v1095 = vmax.f32 %v1063, 0.0
      %v1096 = vmax.f32 %v1064, 0.0
      %v1097 = vmax.f32 %v1065, 0.0
      %v1098 = vmax.f32 %v1066, 0.0
      %v1099 = vmax.f32 %v1067, 0.0
      %v1100 = vmax.f32 %v1068, 0.0
      %v1101 = vmax.f32 %v1069, 0.0
      %v1102 = vmax.f32 %v1070, 0.0
      %v1103 = vmax.f32 %v1071, 0.0
      %v1104 = vmax.f32 %v1072, 0.0
      %v1105 = vmax.f32 %v1073, 0.0
      %v1106 = vmax.f32 %v1074, 0.0
      %v1107 = vmax.f32 %v1075, 0.0
      %v1108 = vmax.f32 %v1076, 0.0
      %v1109 = vmax.f32 %v1077, 0.0
      %v1110 = vmax.f32 %v1078, 0.0
      %v1111 = vmax.f32 %v1079, 0.0
      %v1112 = vmax.f32 %v1080, 0.0
      %v1113 = vmax.f32 %v1081, 0.0
      %v1114 = vmax.f32 %v1082, 0.0
      %v1115 = vmax.f32 %v1083, 0.0
      %v1116 = vmax.f32 %v1084, 0.0
      %v1117 = vmax.f32 %v1085, 0.0
      %v1118 = vmax.f32 %v1086, 0.0
      %v1119 = vmax.f32 %v1087, 0.0
      %v1120 = vmax.f32 %v1088, 0.0
      %v1121 = vmax.f32 %v1089, 0.0
      %v1122 = vmax.f32 %v1090, 0.0
      %v1123 = vmax.f32 %v1091, 0.0
      %v1124 = vmax.f32 %v1092, 0.0
      %v1125 = vmax.f32 %v1093, 0.0
      %v1126 = vsub.f32 %v615, %v838
      %v1127 = vsub.f32 %v618, %v839
      %v1128 = vsub.f32 %v623, %v840
      %v1129 = vsub.f32 %v626, %v841
      %v1130 = vsub.f32 %v631, %v842
      %v1131 = vsub.f32 %v634, %v843
      %v1132 = vsub.f32 %v639, %v844
      %v1133 = vsub.f32 %v642, %v845
      %v1134 = vsub.f32 %v647, %v846
      %v1135 = vsub.f32 %v650, %v847
      %v1136 = vsub.f32 %v655, %v848
      %v1137 = vsub.f32 %v658, %v849
      %v1138 = vsub.f32 %v663, %v850
      %v1139 = vsub.f32 %v666, %v851
      %v1140 = vsub.f32 %v671, %v852
      %v1141 = vsub.f32 %v674, %v853
      %v1142 = vsub.f32 %v679, %v854
      %v1143 = vsub.f32 %v682, %v855
      %v1144 = vsub.f32 %v687, %v856
      %v1145 = vsub.f32 %v690, %v857
      %v1146 = vsub.f32 %v695, %v858
      %v1147 = vsub.f32 %v698, %v859
      %v1148 = vsub.f32 %v703, %v860
      %v1149 = vsub.f32 %v706, %v861
      %v1150 = vsub.f32 %v711, %v862
      %v1151 = vsub.f32 %v714, %v863
      %v1152 = vsub.f32 %v719, %v864
      %v1153 = vsub.f32 %v722, %v865
      %v1154 = vsub.f32 %v727, %v866
      %v1155 = vsub.f32 %v730, %v867
      %v1156 = vsub.f32 %v735, %v868
      %v1157 = vsub.f32 %v738, %v869
      %v1158 = vadd.f32 %v1094, 1e-05
      %v1159 = vadd.f32 %v1095, 1e-05
      %v1160 = vadd.f32 %v1096, 1e-05
      %v1161 = vadd.f32 %v1097, 1e-05
      %v1162 = vadd.f32 %v1098, 1e-05
      %v1163 = vadd.f32 %v1099, 1e-05
      %v1164 = vadd.f32 %v1100, 1e-05
      %v1165 = vadd.f32 %v1101, 1e-05
      %v1166 = vadd.f32 %v1102, 1e-05
      %v1167 = vadd.f32 %v1103, 1e-05
      %v1168 = vadd.f32 %v1104, 1e-05
      %v1169 = vadd.f32 %v1105, 1e-05
      %v1170 = vadd.f32 %v1106, 1e-05
      %v1171 = vadd.f32 %v1107, 1e-05
      %v1172 = vadd.f32 %v1108, 1e-05
      %v1173 = vadd.f32 %v1109, 1e-05
      %v1174 = vadd.f32 %v1110, 1e-05
      %v1175 = vadd.f32 %v1111, 1e-05
      %v1176 = vadd.f32 %v1112, 1e-05
      %v1177 = vadd.f32 %v1113, 1e-05
      %v1178 = vadd.f32 %v1114, 1e-05
      %v1179 = vadd.f32 %v1115, 1e-05
      %v1180 = vadd.f32 %v1116, 1e-05
      %v1181 = vadd.f32 %v1117, 1e-05
      %v1182 = vadd.f32 %v1118, 1e-05
      %v1183 = vadd.f32 %v1119, 1e-05
      %v1184 = vadd.f32 %v1120, 1e-05
      %v1185 = vadd.f32 %v1121, 1e-05
      %v1186 = vadd.f32 %v1122, 1e-05
      %v1187 = vadd.f32 %v1123, 1e-05
      %v1188 = vadd.f32 %v1124, 1e-05
      %v1189 = vadd.f32 %v1125, 1e-05
      %v1190 = vrsqrt.pop %v1158
      %v1191 = vrsqrt.pop %v1159
      %v1192 = vrsqrt.pop %v1160
      %v1193 = vrsqrt.pop %v1161
      %v1194 = vrsqrt.pop %v1162
      %v1195 = vrsqrt.pop %v1163
      %v1196 = vrsqrt.pop %v1164
      %v1197 = vrsqrt.pop %v1165
      %v1198 = vrsqrt.pop %v1166
      %v1199 = vrsqrt.pop %v1167
      %v1200 = vrsqrt.pop %v1168
      %v1201 = vrsqrt.pop %v1169
      %v1202 = vrsqrt.pop %v1170
      %v1203 = vrsqrt.pop %v1171
      %v1204 = vrsqrt.pop %v1172
      %v1205 = vrsqrt.pop %v1173
      %v1206 = vrsqrt.pop %v1174
      %v1207 = vrsqrt.pop %v1175
      %v1208 = vrsqrt.pop %v1176
      %v1209 = vrsqrt.pop %v1177
      %v1210 = vrsqrt.pop %v1178
      %v1211 = vrsqrt.pop %v1179
      %v1212 = vrsqrt.pop %v1180
      %v1213 = vrsqrt.pop %v1181
      %v1214 = vrsqrt.pop %v1182
      %v1215 = vrsqrt.pop %v1183
      %v1216 = vrsqrt.pop %v1184
      %v1217 = vrsqrt.pop %v1185
      %v1218 = vrsqrt.pop %v1186
      %v1219 = vrsqrt.pop %v1187
      %v1220 = vrsqrt.pop %v1188
      %v1221 = vrsqrt.pop %v1189
      %v1222 = vmul.f32 %v1126, %v1190
      %v1223 = vmul.f32 %v1127, %v1191
      %v1224 = vmul.f32 %v1128, %v1192
      %v1225 = vmul.f32 %v1129, %v1193
      %v1226 = vmul.f32 %v1130, %v1194
      %v1227 = vmul.f32 %v1131, %v1195
      %v1228 = vmul.f32 %v1132, %v1196
      %v1229 = vmul.f32 %v1133, %v1197
      %v1230 = vmul.f32 %v1134, %v1198
      %v1231 = vmul.f32 %v1135, %v1199
      %v1232 = vmul.f32 %v1136, %v1200
      %v1233 = vmul.f32 %v1137, %v1201
      %v1234 = vmul.f32 %v1138, %v1202
      %v1235 = vmul.f32 %v1139, %v1203
      %v1236 = vmul.f32 %v1140, %v1204
      %v1237 = vmul.f32 %v1141, %v1205
      %v1238 = vmul.f32 %v1142, %v1206
      %v1239 = vmul.f32 %v1143, %v1207
      %v1240 = vmul.f32 %v1144, %v1208
      %v1241 = vmul.f32 %v1145, %v1209
      %v1242 = vmul.f32 %v1146, %v1210
      %v1243 = vmul.f32 %v1147, %v1211
      %v1244 = vmul.f32 %v1148, %v1212
      %v1245 = vmul.f32 %v1149, %v1213
      %v1246 = vmul.f32 %v1150, %v1214
      %v1247 = vmul.f32 %v1151, %v1215
      %v1248 = vmul.f32 %v1152, %v1216
      %v1249 = vmul.f32 %v1153, %v1217
      %v1250 = vmul.f32 %v1154, %v1218
      %v1251 = vmul.f32 %v1155, %v1219
      %v1252 = vmul.f32 %v1156, %v1220
      %v1253 = vmul.f32 %v1157, %v1221
      %v1254 = vld [vmem:[%s3] sm:$0x1]
      %v1256 = vlaneseq
      %v1257 = vshrl.u32 %v1256, 7
      %v1258 = vsub.s32 0, %v1257
      %v1259 = vrot.slane %v1254, %v1258
      %v1261 = vmul.f32 %v1222, %v1259
      %v1262 = vmul.f32 %v1223, %v1259
      %v1263 = vmul.f32 %v1224, %v1259
      %v1264 = vmul.f32 %v1225, %v1259
      %v1265 = vmul.f32 %v1226, %v1259
      %v1266 = vmul.f32 %v1227, %v1259
      %v1267 = vmul.f32 %v1228, %v1259
      %v1268 = vmul.f32 %v1229, %v1259
      %v1269 = vmul.f32 %v1230, %v1259
      %v1270 = vmul.f32 %v1231, %v1259
      %v1271 = vmul.f32 %v1232, %v1259
      %v1272 = vmul.f32 %v1233, %v1259
      %v1273 = vmul.f32 %v1234, %v1259
      %v1274 = vmul.f32 %v1235, %v1259
      %v1275 = vmul.f32 %v1236, %v1259
      %v1276 = vmul.f32 %v1237, %v1259
      %v1277 = vmul.f32 %v1238, %v1259
      %v1278 = vmul.f32 %v1239, %v1259
      %v1279 = vmul.f32 %v1240, %v1259
      %v1280 = vmul.f32 %v1241, %v1259
      %v1281 = vmul.f32 %v1242, %v1259
      %v1282 = vmul.f32 %v1243, %v1259
      %v1283 = vmul.f32 %v1244, %v1259
      %v1284 = vmul.f32 %v1245, %v1259
      %v1285 = vmul.f32 %v1246, %v1259
      %v1286 = vmul.f32 %v1247, %v1259
      %v1287 = vmul.f32 %v1248, %v1259
      %v1288 = vmul.f32 %v1249, %v1259
      %v1289 = vmul.f32 %v1250, %v1259
      %v1290 = vmul.f32 %v1251, %v1259
      %v1291 = vmul.f32 %v1252, %v1259
      %v1292 = vmul.f32 %v1253, %v1259
      %v1293 = vld [vmem:[%s4] sm:$0x1]
      %v1295 = vlaneseq
      %v1296 = vshrl.u32 %v1295, 7
      %v1297 = vsub.s32 0, %v1296
      %v1298 = vrot.slane %v1293, %v1297
      %v1300 = vadd.f32 %v1261, %v1298
      %v1301 = vadd.f32 %v1262, %v1298
      %v1302 = vadd.f32 %v1263, %v1298
      %v1303 = vadd.f32 %v1264, %v1298
      %v1304 = vadd.f32 %v1265, %v1298
      %v1305 = vadd.f32 %v1266, %v1298
      %v1306 = vadd.f32 %v1267, %v1298
      %v1307 = vadd.f32 %v1268, %v1298
      %v1308 = vadd.f32 %v1269, %v1298
      %v1309 = vadd.f32 %v1270, %v1298
      %v1310 = vadd.f32 %v1271, %v1298
      %v1311 = vadd.f32 %v1272, %v1298
      %v1312 = vadd.f32 %v1273, %v1298
      %v1313 = vadd.f32 %v1274, %v1298
      %v1314 = vadd.f32 %v1275, %v1298
      %v1315 = vadd.f32 %v1276, %v1298
      %v1316 = vadd.f32 %v1277, %v1298
      %v1317 = vadd.f32 %v1278, %v1298
      %v1318 = vadd.f32 %v1279, %v1298
      %v1319 = vadd.f32 %v1280, %v1298
      %v1320 = vadd.f32 %v1281, %v1298
      %v1321 = vadd.f32 %v1282, %v1298
      %v1322 = vadd.f32 %v1283, %v1298
      %v1323 = vadd.f32 %v1284, %v1298
      %v1324 = vadd.f32 %v1285, %v1298
      %v1325 = vadd.f32 %v1286, %v1298
      %v1326 = vadd.f32 %v1287, %v1298
      %v1327 = vadd.f32 %v1288, %v1298
      %v1328 = vadd.f32 %v1289, %v1298
      %v1329 = vadd.f32 %v1290, %v1298
      %v1330 = vadd.f32 %v1291, %v1298
      %v1331 = vadd.f32 %v1292, %v1298
      %1332 = vst.msk [vmem:[%s265] sm:$0xff] %vm741, %v1300
      %1333 = vst.msk [vmem:[%s265 + $0x8] sm:$0xff] %vm741, %v1301
      %1334 = vst.msk [vmem:[%s265 + $0x10] sm:$0xff] %vm741, %v1302
      %1335 = vst.msk [vmem:[%s265 + $0x18] sm:$0xff] %vm741, %v1303
      %1336 = vst.msk [vmem:[%s265 + $0x20] sm:$0xff] %vm741, %v1304
      %1337 = vst.msk [vmem:[%s265 + $0x28] sm:$0xff] %vm741, %v1305
      %1338 = vst.msk [vmem:[%s265 + $0x30] sm:$0xff] %vm741, %v1306
      %1339 = vst.msk [vmem:[%s265 + $0x38] sm:$0xff] %vm741, %v1307
      %1340 = vst.msk [vmem:[%s265 + $0x40] sm:$0xff] %vm741, %v1308
      %1341 = vst.msk [vmem:[%s265 + $0x48] sm:$0xff] %vm741, %v1309
      %1342 = vst.msk [vmem:[%s265 + $0x50] sm:$0xff] %vm741, %v1310
      %1343 = vst.msk [vmem:[%s265 + $0x58] sm:$0xff] %vm741, %v1311
      %1344 = vst.msk [vmem:[%s265 + $0x60] sm:$0xff] %vm741, %v1312
      %1345 = vst.msk [vmem:[%s265 + $0x68] sm:$0xff] %vm741, %v1313
      %1346 = vst.msk [vmem:[%s265 + $0x70] sm:$0xff] %vm741, %v1314
      %1347 = vst.msk [vmem:[%s265 + $0x78] sm:$0xff] %vm741, %v1315
      %1348 = vst.msk [vmem:[%s265 + $0x80] sm:$0xff] %vm741, %v1316
      %1349 = vst.msk [vmem:[%s265 + $0x88] sm:$0xff] %vm741, %v1317
      %1350 = vst.msk [vmem:[%s265 + $0x90] sm:$0xff] %vm741, %v1318
      %1351 = vst.msk [vmem:[%s265 + $0x98] sm:$0xff] %vm741, %v1319
      %1352 = vst.msk [vmem:[%s265 + $0xa0] sm:$0xff] %vm741, %v1320
      %1353 = vst.msk [vmem:[%s265 + $0xa8] sm:$0xff] %vm741, %v1321
      %1354 = vst.msk [vmem:[%s265 + $0xb0] sm:$0xff] %vm741, %v1322
      %1355 = vst.msk [vmem:[%s265 + $0xb8] sm:$0xff] %vm741, %v1323
      %1356 = vst.msk [vmem:[%s265 + $0xc0] sm:$0xff] %vm741, %v1324
      %1357 = vst.msk [vmem:[%s265 + $0xc8] sm:$0xff] %vm741, %v1325
      %1358 = vst.msk [vmem:[%s265 + $0xd0] sm:$0xff] %vm741, %v1326
      %1359 = vst.msk [vmem:[%s265 + $0xd8] sm:$0xff] %vm741, %v1327
      %1360 = vst.msk [vmem:[%s265 + $0xe0] sm:$0xff] %vm741, %v1328
      %1361 = vst.msk [vmem:[%s265 + $0xe8] sm:$0xff] %vm741, %v1329
      %1362 = vst.msk [vmem:[%s265 + $0xf0] sm:$0xff] %vm741, %v1330
      %1363 = vst.msk [vmem:[%s265 + $0xf8] sm:$0xff] %vm741, %v1331
      %s1364 = smul.u32 32, %s21
      %p1365 = scmp.lt.s32.totalorder %s20, 1
      %s1366 = scalar_select %p1365, %s20, 1
      %p1367 = scmp.lt.s32.totalorder %s1364, 31
      %s1368 = scalar_select %p1367, %s1364, 31
      %s1369 = smul.addr %s1366, 32
      %s1370 = sadd.s32 %s1368, %s1369
      %s1371 = smul.addr %s1370, 8
      %s1372 = scalar_lea.vmem %s5, %s1371
      // Predicated region
      $region41: #{tpu_custom_call.1} parent=39 // pred_check
        %p1373 = pneg %p160
      $region42: #{tpu_custom_call.1} parent=39 // pred_check_branch
        %1375 = sbr.rel (%p1373) target = $region44
      $region43: #{tpu_custom_call.1} parent=39 // pred_region
        %s1376 = smul.u32 32, %s21
      $region44: #{tpu_custom_call.1} parent=39 // pred_fallthru
        _
    $region40: #{tpu_custom_call.1} parent=5 // pred_fallthru
      _
    %p1377 = scmp.le.s32.totalorder 2, %s11
    // Predicated region
    $region45: #{tpu_custom_call.1} parent=5 // pred_check
      %p1378 = pneg %p1377
    $region46: #{tpu_custom_call.1} parent=5 // pred_check_branch
      %1380 = sbr.rel (%p1378) target = $region48
    $region47: #{tpu_custom_call.1} parent=5 // pred_region
      %s1381 = ssub.s32 %s11, 2
      // Predicated region
      $region49: #{tpu_custom_call.1} parent=47 // pred_check
        %p1382 = pneg %p166
      $region50: #{tpu_custom_call.1} parent=47 // pred_check_branch
        %1384 = sbr.rel (%p1382) target = $region52
      $region51: #{tpu_custom_call.1} parent=47 // pred_region
        %s1385 = smul.u32 32, %s23
        %p1386 = scmp.lt.s32.totalorder %s22, 1
        %s1387 = scalar_select %p1386, %s22, 1
        %p1388 = scmp.lt.s32.totalorder %s1385, 31
        %s1389 = scalar_select %p1388, %s1385, 31
        %s1390 = smul.addr %s1387, 32
        %s1391 = sadd.s32 %s1389, %s1390
        %s1392 = smul.addr %s1391, 8
        %s1393 = scalar_lea.vmem %s5, %s1392
      $region52: #{tpu_custom_call.1} parent=47 // pred_fallthru
        _
    $region48: #{tpu_custom_call.1} parent=5 // pred_fallthru
      _
  $region6: #{tpu_custom_call.1} parent=0 // loop_footer
    %s15 = sadd.s32 1, %s11
  $region7: #{tpu_custom_call.1} parent=0 // loop_footer_branch
    %10 = sbr.rel target = $region3
  $region8: #{tpu_custom_call.1} parent=0 // loop_exit
    _

</llo_original>
